<compile_context>
chip_gen: v7x
topology: tpu7x:2x2x1
jax: 0.10.0
libtpu: 0.0.40
codegen_flags: <defaults>
</compile_context>

<pallas_src>
import jax
import jax.numpy as jnp
from jax.experimental import pallas as pl
from jax.experimental.pallas import tpu as pltpu


def attention_gate_kernel(e_ref, d_ref, we_ref, wd_ref, b1_ref, wo_ref, bo_ref,
                          o_ref):
    # e_ref: (Ce, T), d_ref: (Cd, T) -- pixels on lanes, channels on sublanes.
    # Native (bf16) tiles go straight to the MXU; accumulate in f32.
    e = e_ref[...]
    d = d_ref[...]

    # First stage: two 1x1 convs (BN folded), single f32 accumulator,
    # one pre-summed bias, ReLU.
    a = jnp.dot(we_ref[...], e, preferred_element_type=jnp.float32)
    a += jnp.dot(wd_ref[...], d, preferred_element_type=jnp.float32)
    a = jnp.maximum(a + b1_ref[...], 0.0)

    # Output 1x1 conv + sigmoid gate (bf16 operands, f32 accumulate, EUP exp).
    g = jnp.dot(wo_ref[...], a.astype(wo_ref.dtype),
                preferred_element_type=jnp.float32)
    g = jax.nn.sigmoid(g + bo_ref[...])

    # Gate applied to encoder features; lane-dense bf16 store.
    o_ref[...] = (g * e).astype(o_ref.dtype)


def _default_vmem_limit_bytes():
    """~75% of per-core VMEM (48 MiB on v7x, 96 MiB on v5e/v6e)."""
    try:
        cap = pltpu.get_tpu_info().vmem_capacity_bytes
    except Exception:
        cap = 64 << 20  # conservative fallback (v7x per-core VMEM)
    return min(int(cap * 3 // 4), 96 << 20)


def _pick_tile_hw(hw, ce, cd, co, n_batch, *, in_itemsize, out_itemsize,
                  vmem_budget, max_tile=32768):
    """Largest lane tile (multiple of 128) whose full VMEM footprint
    (double-buffered e/d/out blocks + f32 intermediates a/g/g*e) fits the
    budget; prefers a tile that divides HW exactly."""
    if hw <= 128:
        return hw  # full last dim is always a legal block
    bytes_per_col = (2 * in_itemsize * (ce + cd)      # double-buffered e, d
                     + 2 * out_itemsize * ce          # double-buffered out
                     + 4 * (2 * co + ce))             # f32 temporaries a, g, g*e
    fit = int(vmem_budget // max(bytes_per_col, 1))
    tile = max(128, min(hw, max_tile, fit))
    tile = (tile // 128) * 128
    # Keep >= 2 HW tiles when the batch axis alone can't feed 2 TCs (v7x).
    if n_batch == 1 and hw >= 256:
        tile = min(tile, max(128, ((hw + 255) // 256) * 128))
    # Prefer a tile that divides HW exactly (no masked partial stores).
    if hw % 128 == 0:
        t = tile
        while t > 128 and hw % t != 0:
            t -= 128
        if hw % t == 0 and t >= tile // 2:
            tile = t
    return tile


def attention_gate_pallas(e_nchw, d_nchw, params, *, tile_hw=None,
                          vmem_limit_bytes=None):
    """e_nchw: (N, Ce, H, W), d_nchw: (N, Cd, H, W). Returns (N, Ce, H, W)."""
    N, Ce, H, W = e_nchw.shape
    _, Cd, _, _ = d_nchw.shape
    Co = params["we"].shape[0]
    assert Co == Ce, "output channels must match encoder channels for `out * e`"

    HW = H * W
    # Free reshapes (contiguous trailing-dim merge); no transposes.
    e3 = e_nchw.reshape(N, Ce, HW)
    d3 = d_nchw.reshape(N, Cd, HW)

    if vmem_limit_bytes is None:
        vmem_limit_bytes = _default_vmem_limit_bytes()
    if tile_hw is None:
        tile_hw = _pick_tile_hw(
            HW, Ce, Cd, Co, N,
            in_itemsize=e_nchw.dtype.itemsize,
            out_itemsize=e_nchw.dtype.itemsize,
            vmem_budget=int(vmem_limit_bytes * 0.6))

    grid = (N, pl.cdiv(HW, tile_hw))

    def pix_spec(c):
        # batch dim squeezed; channels full (sublanes); pixel tile on lanes.
        return pl.BlockSpec((None, c, tile_hw), lambda n, j: (n, 0, j))

    def w_spec(shape):
        # Small, grid-invariant weight/bias blocks (constant index_map, so the
        # pipeline does not re-fetch them between steps).
        return pl.BlockSpec(shape, lambda n, j: (0, 0))

    out3 = pl.pallas_call(
        attention_gate_kernel,
        out_shape=jax.ShapeDtypeStruct((N, Ce, HW), e_nchw.dtype),
        grid_spec=pltpu.PrefetchScalarGridSpec(
            num_scalar_prefetch=0,
            grid=grid,
            in_specs=[
                pix_spec(Ce),                       # e pixels  (Ce, T)
                pix_spec(Cd),                       # d pixels  (Cd, T)
                w_spec(params["we"].shape),         # We (Co, Ce)   bf16
                w_spec(params["wd"].shape),         # Wd (Co, Cd)   bf16
                w_spec(params["b1"].shape),         # be+bd (Co, 1) f32
                w_spec(params["wo"].shape),         # Wo (Co, Co)   bf16
                w_spec(params["bo"].shape),         # bo (Co, 1)    f32
            ],
            out_specs=pix_spec(Ce),
        ),
        compiler_params=pltpu.CompilerParams(
            dimension_semantics=("parallel", "parallel"),
            vmem_limit_bytes=vmem_limit_bytes),
    )(e3, d3, params["we"], params["wd"], params["b1"],
      params["wo"], params["bo"])

    return out3.reshape(N, Ce, H, W)


def fold_conv_bn(w, b, gamma, beta, mean, var, eps=1e-5):
    """Fold eval-mode BatchNorm into a 1x1 conv expressed as (Co, Cin) matmul."""
    scale = gamma / jnp.sqrt(var + eps)             # (Co,)
    w_f = w * scale[:, None]                        # (Co, Cin)
    b_f = (b - mean) * scale + beta                 # (Co,)
    return w_f, b_f


def make_params(key, c_e, c_d, c_out, weight_dtype=jnp.bfloat16):
    ks = jax.random.split(key, 14)
    f32 = jnp.float32
    # conv weights stored as (Cout, Cin) (PyTorch (Co, Cin, 1, 1) squeezed)
    we = jax.random.normal(ks[0], (c_out, c_e), f32) * 0.1
    be = jax.random.normal(ks[1], (c_out,), f32) * 0.1
    wd = jax.random.normal(ks[2], (c_out, c_d), f32) * 0.1
    bd = jax.random.normal(ks[3], (c_out,), f32) * 0.1
    # BatchNorm params (eval mode, non-trivial running stats)
    ge = 1.0 + 0.1 * jax.random.normal(ks[4], (c_out,), f32)
    bne = 0.1 * jax.random.normal(ks[5], (c_out,), f32)
    me = 0.1 * jax.random.normal(ks[6], (c_out,), f32)
    ve = 1.0 + 0.1 * jax.random.uniform(ks[7], (c_out,), f32)
    gd = 1.0 + 0.1 * jax.random.normal(ks[8], (c_out,), f32)
    bnd = 0.1 * jax.random.normal(ks[9], (c_out,), f32)
    md = 0.1 * jax.random.normal(ks[10], (c_out,), f32)
    vd = 1.0 + 0.1 * jax.random.uniform(ks[11], (c_out,), f32)
    # output conv (no BN)
    wo = jax.random.normal(ks[12], (c_out, c_out), f32) * 0.1
    bo = jax.random.normal(ks[13], (c_out,), f32) * 0.1

    we_f, be_f = fold_conv_bn(we, be, ge, bne, me, ve)
    wd_f, bd_f = fold_conv_bn(wd, bd, gd, bnd, md, vd)
    return {
        # Weights in bf16 (MXU-native); biases kept f32 (added post-accumulate).
        "we": we_f.astype(weight_dtype),
        "wd": wd_f.astype(weight_dtype),
        "b1": (be_f + bd_f).reshape(-1, 1),   # pre-summed bias, f32
        "wo": wo.astype(weight_dtype),
        "bo": bo.reshape(-1, 1),               # f32
    }


def attention_gate_ref(e_nchw, d_nchw, params):
    """Pure-JAX f32 reference of the same folded math (NCHW in/out)."""
    e = e_nchw.astype(jnp.float32)
    d = d_nchw.astype(jnp.float32)
    we = params["we"].astype(jnp.float32)
    wd = params["wd"].astype(jnp.float32)
    wo = params["wo"].astype(jnp.float32)
    a = jnp.maximum(
        jnp.einsum("oc,nchw->nohw", we, e)
        + jnp.einsum("oc,nchw->nohw", wd, d)
        + params["b1"].reshape(1, -1, 1, 1), 0.0)
    g = jax.nn.sigmoid(jnp.einsum("oc,nchw->nohw", wo, a)
                       + params["bo"].reshape(1, -1, 1, 1))
    return g * e


if __name__ == "__main__":
    # in_channels = (Ce, Cd), out_channels = Ce (required so `out * e` broadcasts)
    N, Ce, Cd, H, W = 2, 4, 8, 16, 16
    key = jax.random.PRNGKey(0)
    k_e, k_d, k_p = jax.random.split(key, 3)

    e = jax.random.normal(k_e, (N, Ce, H, W), jnp.float32).astype(jnp.bfloat16)
    d = jax.random.normal(k_d, (N, Cd, H, W), jnp.float32).astype(jnp.bfloat16)
    params = make_params(k_p, Ce, Cd, Ce)

    out = attention_gate_pallas(e, d, params)
    out = jax.block_until_ready(out)

    ref = attention_gate_ref(e, d, params)
    assert out.shape == (N, Ce, H, W)
    assert out.dtype == jnp.bfloat16
    max_err = jnp.max(jnp.abs(out.astype(jnp.float32) - ref))
    assert max_err < 3e-2, f"max abs err {max_err}"

    print("KERNEL_OK")
</pallas_src>

<mosaic_0001>
module attributes {stable_mosaic.version = 11 : i64} {
  func.func @attention_gate_kernel(%arg0: i32, %arg1: i32, %arg2: memref<1x4x256xbf16, #tpu.memory_space<vmem>>, %arg3: memref<1x8x256xbf16, #tpu.memory_space<vmem>>, %arg4: memref<4x4xbf16, #tpu.memory_space<vmem>>, %arg5: memref<4x8xbf16, #tpu.memory_space<vmem>>, %arg6: memref<4x1xf32, #tpu.memory_space<vmem>>, %arg7: memref<4x4xbf16, #tpu.memory_space<vmem>>, %arg8: memref<4x1xf32, #tpu.memory_space<vmem>>, %arg9: memref<1x4x256xbf16, #tpu.memory_space<vmem>>) attributes {dimension_semantics = [#tpu.dimension_semantics<parallel>, #tpu.dimension_semantics<parallel>], iteration_bounds = array<i64: 2, 1>, scalar_prefetch = 0 : i64, scratch_operands = 0 : i64, tpu.core_type = #tpu.core_type<tc>, window_params = [{transform_indices = @transform_0, window_bounds = array<i64: 1, 4, 256>}, {transform_indices = @transform_1, window_bounds = array<i64: 1, 8, 256>}, {pipeline_mode = #tpu.pipeline_mode<synchronous>, transform_indices = @transform_2, window_bounds = array<i64: 4, 4>}, {pipeline_mode = #tpu.pipeline_mode<synchronous>, transform_indices = @transform_3, window_bounds = array<i64: 4, 8>}, {pipeline_mode = #tpu.pipeline_mode<synchronous>, transform_indices = @transform_4, window_bounds = array<i64: 4, 1>}, {pipeline_mode = #tpu.pipeline_mode<synchronous>, transform_indices = @transform_5, window_bounds = array<i64: 4, 4>}, {pipeline_mode = #tpu.pipeline_mode<synchronous>, transform_indices = @transform_6, window_bounds = array<i64: 4, 1>}, {transform_indices = @transform_7, window_bounds = array<i64: 1, 4, 256>}]} {
    %c0 = arith.constant 0 : index
    %c0_0 = arith.constant 0 : index
    %c0_1 = arith.constant 0 : index
    %0 = vector.load %arg2[%c0, %c0_0, %c0_1] : memref<1x4x256xbf16, #tpu.memory_space<vmem>>, vector<1x4x256xbf16>
    %1 = vector.shape_cast %0 : vector<1x4x256xbf16> to vector<4x256xbf16>
    %c0_2 = arith.constant 0 : index
    %c0_3 = arith.constant 0 : index
    %c0_4 = arith.constant 0 : index
    %2 = vector.load %arg3[%c0_2, %c0_3, %c0_4] : memref<1x8x256xbf16, #tpu.memory_space<vmem>>, vector<1x8x256xbf16>
    %3 = vector.shape_cast %2 : vector<1x8x256xbf16> to vector<8x256xbf16>
    %c0_5 = arith.constant 0 : index
    %c0_6 = arith.constant 0 : index
    %4 = vector.load %arg4[%c0_5, %c0_6] : memref<4x4xbf16, #tpu.memory_space<vmem>>, vector<4x4xbf16>
    %cst = arith.constant dense<0.000000e+00> : vector<4x256xf32>
    %5 = tpu.matmul %4, %1, %cst {dimension_numbers = #tpu.dot_dimension_numbers<[1], [0], [0], [1], [0, 0, 1, 1], [], []>} : vector<4x4xbf16>, vector<4x256xbf16>, vector<4x256xf32> -> vector<4x256xf32>
    %c0_7 = arith.constant 0 : index
    %c0_8 = arith.constant 0 : index
    %6 = vector.load %arg5[%c0_7, %c0_8] : memref<4x8xbf16, #tpu.memory_space<vmem>>, vector<4x8xbf16>
    %cst_9 = arith.constant dense<0.000000e+00> : vector<4x256xf32>
    %7 = tpu.matmul %6, %3, %cst_9 {dimension_numbers = #tpu.dot_dimension_numbers<[1], [0], [0], [1], [0, 0, 1, 1], [], []>} : vector<4x8xbf16>, vector<8x256xbf16>, vector<4x256xf32> -> vector<4x256xf32>
    %8 = arith.addf %5, %7 : vector<4x256xf32>
    %c0_10 = arith.constant 0 : index
    %c0_11 = arith.constant 0 : index
    %9 = vector.load %arg6[%c0_10, %c0_11] : memref<4x1xf32, #tpu.memory_space<vmem>>, vector<4x1xf32>
    %10 = vector.broadcast %9 : vector<4x1xf32> to vector<4x256xf32>
    %11 = arith.addf %8, %10 : vector<4x256xf32>
    %cst_12 = arith.constant 0.000000e+00 : f32
    %12 = vector.broadcast %cst_12 : f32 to vector<4x256xf32>
    %13 = arith.maximumf %11, %12 : vector<4x256xf32>
    %c0_13 = arith.constant 0 : index
    %c0_14 = arith.constant 0 : index
    %14 = vector.load %arg7[%c0_13, %c0_14] : memref<4x4xbf16, #tpu.memory_space<vmem>>, vector<4x4xbf16>
    %15 = arith.truncf %13 : vector<4x256xf32> to vector<4x256xbf16>
    %cst_15 = arith.constant dense<0.000000e+00> : vector<4x256xf32>
    %16 = tpu.matmul %14, %15, %cst_15 {dimension_numbers = #tpu.dot_dimension_numbers<[1], [0], [0], [1], [0, 0, 1, 1], [], []>} : vector<4x4xbf16>, vector<4x256xbf16>, vector<4x256xf32> -> vector<4x256xf32>
    %c0_16 = arith.constant 0 : index
    %c0_17 = arith.constant 0 : index
    %17 = vector.load %arg8[%c0_16, %c0_17] : memref<4x1xf32, #tpu.memory_space<vmem>>, vector<4x1xf32>
    %18 = vector.broadcast %17 : vector<4x1xf32> to vector<4x256xf32>
    %19 = arith.addf %16, %18 : vector<4x256xf32>
    %20 = arith.negf %19 : vector<4x256xf32>
    %21 = math.exp %20 : vector<4x256xf32>
    %cst_18 = arith.constant 1.000000e+00 : f32
    %22 = vector.broadcast %cst_18 : f32 to vector<4x256xf32>
    %23 = arith.addf %22, %21 : vector<4x256xf32>
    %24 = arith.divf %22, %23 : vector<4x256xf32>
    %25 = arith.extf %1 : vector<4x256xbf16> to vector<4x256xf32>
    %26 = arith.mulf %24, %25 : vector<4x256xf32>
    %27 = arith.truncf %26 : vector<4x256xf32> to vector<4x256xbf16>
    %c0_19 = arith.constant 0 : index
    %c0_20 = arith.constant 0 : index
    %c0_21 = arith.constant 0 : index
    %28 = vector.load %arg9[%c0_19, %c0_20, %c0_21] : memref<1x4x256xbf16, #tpu.memory_space<vmem>>, vector<1x4x256xbf16>
    %29 = vector.shape_cast %28 : vector<1x4x256xbf16> to vector<4x256xbf16>
    %30 = vector.shape_cast %27 : vector<4x256xbf16> to vector<1x4x256xbf16>
    tpu.vector_store %arg9[%c0_19, %c0_20, %c0_21], %30 {strides = array<i32>} : memref<1x4x256xbf16, #tpu.memory_space<vmem>>, vector<1x4x256xbf16>,
    return
  }
  func.func @transform_0(%arg0: i32, %arg1: i32) -> (i32, i32, i32) {
    %c0_i32 = arith.constant 0 : i32
    %c0_i32_0 = arith.constant 0 : i32
    return %arg0, %c0_i32, %arg1 : i32, i32, i32
  }
  func.func @transform_1(%arg0: i32, %arg1: i32) -> (i32, i32, i32) {
    %c0_i32 = arith.constant 0 : i32
    %c0_i32_0 = arith.constant 0 : i32
    return %arg0, %c0_i32, %arg1 : i32, i32, i32
  }
  func.func @transform_2(%arg0: i32, %arg1: i32) -> (i32, i32) {
    %c0_i32 = arith.constant 0 : i32
    %c0_i32_0 = arith.constant 0 : i32
    %c0_i32_1 = arith.constant 0 : i32
    return %c0_i32, %c0_i32_0 : i32, i32
  }
  func.func @transform_3(%arg0: i32, %arg1: i32) -> (i32, i32) {
    %c0_i32 = arith.constant 0 : i32
    %c0_i32_0 = arith.constant 0 : i32
    %c0_i32_1 = arith.constant 0 : i32
    return %c0_i32, %c0_i32_0 : i32, i32
  }
  func.func @transform_4(%arg0: i32, %arg1: i32) -> (i32, i32) {
    %c0_i32 = arith.constant 0 : i32
    %c0_i32_0 = arith.constant 0 : i32
    %c0_i32_1 = arith.constant 0 : i32
    return %c0_i32, %c0_i32_0 : i32, i32
  }
  func.func @transform_5(%arg0: i32, %arg1: i32) -> (i32, i32) {
    %c0_i32 = arith.constant 0 : i32
    %c0_i32_0 = arith.constant 0 : i32
    %c0_i32_1 = arith.constant 0 : i32
    return %c0_i32, %c0_i32_0 : i32, i32
  }
  func.func @transform_6(%arg0: i32, %arg1: i32) -> (i32, i32) {
    %c0_i32 = arith.constant 0 : i32
    %c0_i32_0 = arith.constant 0 : i32
    %c0_i32_1 = arith.constant 0 : i32
    return %c0_i32, %c0_i32_0 : i32, i32
  }
  func.func @transform_7(%arg0: i32, %arg1: i32) -> (i32, i32, i32) {
    %c0_i32 = arith.constant 0 : i32
    %c0_i32_0 = arith.constant 0 : i32
    return %arg0, %c0_i32, %arg1 : i32, i32, i32
  }
}

</mosaic_0001>

<llo_original>
// kernel: tpu_custom_call.1
$region0: #{tpu_custom_call.1}
  #allocation0 [shape = 'u32[]', space=smem, size = 0x4, offset = 0x4, fixed_abs, tag = 'smem constant byte address 0x4 - core index']
  #allocation1 [shape = 'u32[144,128]{1,0:T(1,128)}', space=vmem, size = 0x12000, scoped, tag = 'internal scratch']
  %s0 = inlined_call_operand.vmem [shape: bf16[2,4,256], index: 0, kind: input, shape index: {}]
  %s1 = inlined_call_operand.hbm [shape: bf16[2,8,256], index: 1, kind: input, shape index: {}]
  %s2 = inlined_call_operand.vmem [shape: bf16[4,4], index: 2, kind: input, shape index: {}]
  %s3 = inlined_call_operand.vmem [shape: bf16[4,8], index: 3, kind: input, shape index: {}]
  %s4 = inlined_call_operand.vmem [shape: f32[4,1], index: 4, kind: input, shape index: {}]
  %s5 = inlined_call_operand.vmem [shape: bf16[4,4], index: 5, kind: input, shape index: {}]
  %s6 = inlined_call_operand.vmem [shape: f32[4,1], index: 6, kind: input, shape index: {}]
  %s7 = inlined_call_operand.hbm [shape: bf16[2,4,256], index: 7, kind: output, shape index: {}]
  %s8 = sld [smem:[#allocation0]]
  $region65: #{tpu_custom_call.1} parent=0
    _
  %s10 = ssub.s32 1, %s8
  %s11 = scalar_select 0, %s10, %s8
  $region1: #{tpu_custom_call.1} parent=0
    #allocation2 [shape = 'u8[8192]{0}', space=vmem, size = 0x2000, scoped, tag = 'input window, operand 1']
    #allocation3 [shape = 's32[2]{0}', space=sflag, size = 0x8, scoped, tag = 'scoped memory for tpu_custom_call.1']
    #allocation4 [shape = 's32[2]{0}', space=sflag, size = 0x8, scoped, tag = 'scoped memory for tpu_custom_call.1']
    #allocation5 [shape = 'u8[4096]{0}', space=vmem, size = 0x1000, scoped, tag = 'output window, operand 0']
    %12 = vsyncpa [#allocation3], 0
    %s13 = scalar_lea.sflag [#allocation3], 1
    %14 = vsyncpa %s13, 0
    %15 = vsyncpa [#allocation4], 0
    %s16 = scalar_lea.sflag [#allocation4], 1
    %17 = vsyncpa %s16, 0
    loop: start=0, step=1, limit=4
    $region2: #{tpu_custom_call.1} parent=1 // loop_pre_header
      _
    $region3: #{tpu_custom_call.1} parent=1 // loop_header
      %s19 = sphi 0, %s23
      %p20 = scmp.ge.s32.totalorder %s19, 4
      %s26 = sphi 0, %s38
      %s27 = sphi 0, %s34
      %s28 = sphi 0, %s26
      %s29 = sphi 0, %s27
      %s30 = sphi 0, %s28
      %s31 = sphi 0, %s29
      %s43 = sphi 0, %s45
      %s46 = sphi 0, %s43
      %s47 = sphi 0, %s46
      %s63 = sphi 0, %s47
      %s71 = sphi 0, %s73
      %s74 = sphi 0, %s71
      %s75 = sphi 0, %s74
      %s91 = sphi 0, %s75
      %s95 = sphi 0, %s95
      %s97 = sphi 0, %s95
      %s98 = sphi 0, %s97
      %s112 = sphi 0, %s98
      %s116 = sphi 0, %s116
      %s118 = sphi 0, %s116
      %s119 = sphi 0, %s118
      %s133 = sphi 0, %s119
      %s137 = sphi 0, %s137
      %s139 = sphi 0, %s137
      %s140 = sphi 0, %s139
      %s154 = sphi 0, %s140
      %s158 = sphi 0, %s158
      %s160 = sphi 0, %s158
      %s161 = sphi 0, %s160
      %s175 = sphi 0, %s161
      %s179 = sphi 0, %s179
      %s181 = sphi 0, %s179
      %s182 = sphi 0, %s181
      %s196 = sphi 0, %s182
      %s204 = sphi 0, %s206
      %s207 = sphi 0, %s204
      %s208 = sphi 0, %s207
      %s224 = sphi 0, %s208
    $region4: #{tpu_custom_call.1} parent=1 // loop_header_branch
      %22 = sbr.rel (%p20) target = $region8
    $region5: #{tpu_custom_call.1} parent=1 // loop_body
      %s24 = ssub.s32 %s19, 1
      %s25 = ssub.s32 %s19, 2
      %s32 = sadd.s32 1, %s27
      %p33 = scmp.ge.s32.totalorder %s32, 1
      %s34 = scalar_select %p33, 0, %s32
      %s35 = sadd.s32 1, %s26
      %s36 = scalar_select %p33, %s35, %s26
      %p37 = scmp.ge.s32.totalorder %s36, 2
      %s38 = scalar_select %p37, 0, %s36
      %s39 = ssub.s32 %s26, %s38
      %s40 = ssub.s32 %s27, %s34
      %s41 = sor.u32 %s39, %s40
      %p42 = scmp.eq.s32.totalorder %s41, 0
      %s44 = sadd.s32 %s43, 1
      %s45 = scalar_select %p42, %s43, %s44
      %p48 = pneg %p42
      %p49 = scmp.eq.s32.totalorder %s19, 1
      %p50 = por %p48, %p49
      %p51 = scmp.ne.s32.totalorder %s43, %s46
      %p52 = scmp.eq.s32.totalorder %s19, 0
      %p53 = por %p51, %p52
      %p54 = scmp.ne.s32.totalorder %s43, %s46
      %p55 = scmp.eq.s32.totalorder %s24, 1
      %p56 = por %p54, %p55
      %p57 = scmp.ne.s32.totalorder %s46, %s47
      %p58 = scmp.eq.s32.totalorder %s24, 0
      %p59 = por %p57, %p58
      %p60 = scmp.ne.s32.totalorder %s46, %s47
      %p61 = scmp.eq.s32.totalorder %s25, 1
      %p62 = por %p60, %p61
      %p64 = scmp.ne.s32.totalorder %s47, %s63
      %p65 = scmp.eq.s32.totalorder %s25, 0
      %p66 = por %p64, %p65
      %s67 = ssub.s32 %s26, %s38
      %s68 = ssub.s32 %s27, %s34
      %s69 = sor.u32 %s67, %s68
      %p70 = scmp.eq.s32.totalorder %s69, 0
      %s72 = sadd.s32 %s71, 1
      %s73 = scalar_select %p70, %s71, %s72
      %p76 = pneg %p70
      %p77 = scmp.eq.s32.totalorder %s19, 1
      %p78 = por %p76, %p77
      %p79 = scmp.ne.s32.totalorder %s71, %s74
      %p80 = scmp.eq.s32.totalorder %s19, 0
      %p81 = por %p79, %p80
      %p82 = scmp.ne.s32.totalorder %s71, %s74
      %p83 = scmp.eq.s32.totalorder %s24, 1
      %p84 = por %p82, %p83
      %p85 = scmp.ne.s32.totalorder %s74, %s75
      %p86 = scmp.eq.s32.totalorder %s24, 0
      %p87 = por %p85, %p86
      %p88 = scmp.ne.s32.totalorder %s74, %s75
      %p89 = scmp.eq.s32.totalorder %s25, 1
      %p90 = por %p88, %p89
      %p92 = scmp.ne.s32.totalorder %s75, %s91
      %p93 = scmp.eq.s32.totalorder %s25, 0
      %p94 = por %p92, %p93
      %s96 = sadd.s32 %s95, 1
      %p99 = scmp.eq.s32.totalorder %s19, 1
      %p100 = scmp.ne.s32.totalorder %s95, %s97
      %p101 = scmp.eq.s32.totalorder %s19, 0
      %p102 = por %p100, %p101
      %p103 = scmp.ne.s32.totalorder %s95, %s97
      %p104 = scmp.eq.s32.totalorder %s24, 1
      %p105 = por %p103, %p104
      %p106 = scmp.ne.s32.totalorder %s97, %s98
      %p107 = scmp.eq.s32.totalorder %s24, 0
      %p108 = por %p106, %p107
      %p109 = scmp.ne.s32.totalorder %s97, %s98
      %p110 = scmp.eq.s32.totalorder %s25, 1
      %p111 = por %p109, %p110
      %p113 = scmp.ne.s32.totalorder %s98, %s112
      %p114 = scmp.eq.s32.totalorder %s25, 0
      %p115 = por %p113, %p114
      %s117 = sadd.s32 %s116, 1
      %p120 = scmp.eq.s32.totalorder %s19, 1
      %p121 = scmp.ne.s32.totalorder %s116, %s118
      %p122 = scmp.eq.s32.totalorder %s19, 0
      %p123 = por %p121, %p122
      %p124 = scmp.ne.s32.totalorder %s116, %s118
      %p125 = scmp.eq.s32.totalorder %s24, 1
      %p126 = por %p124, %p125
      %p127 = scmp.ne.s32.totalorder %s118, %s119
      %p128 = scmp.eq.s32.totalorder %s24, 0
      %p129 = por %p127, %p128
      %p130 = scmp.ne.s32.totalorder %s118, %s119
      %p131 = scmp.eq.s32.totalorder %s25, 1
      %p132 = por %p130, %p131
      %p134 = scmp.ne.s32.totalorder %s119, %s133
      %p135 = scmp.eq.s32.totalorder %s25, 0
      %p136 = por %p134, %p135
      %s138 = sadd.s32 %s137, 1
      %p141 = scmp.eq.s32.totalorder %s19, 1
      %p142 = scmp.ne.s32.totalorder %s137, %s139
      %p143 = scmp.eq.s32.totalorder %s19, 0
      %p144 = por %p142, %p143
      %p145 = scmp.ne.s32.totalorder %s137, %s139
      %p146 = scmp.eq.s32.totalorder %s24, 1
      %p147 = por %p145, %p146
      %p148 = scmp.ne.s32.totalorder %s139, %s140
      %p149 = scmp.eq.s32.totalorder %s24, 0
      %p150 = por %p148, %p149
      %p151 = scmp.ne.s32.totalorder %s139, %s140
      %p152 = scmp.eq.s32.totalorder %s25, 1
      %p153 = por %p151, %p152
      %p155 = scmp.ne.s32.totalorder %s140, %s154
      %p156 = scmp.eq.s32.totalorder %s25, 0
      %p157 = por %p155, %p156
      %s159 = sadd.s32 %s158, 1
      %p162 = scmp.eq.s32.totalorder %s19, 1
      %p163 = scmp.ne.s32.totalorder %s158, %s160
      %p164 = scmp.eq.s32.totalorder %s19, 0
      %p165 = por %p163, %p164
      %p166 = scmp.ne.s32.totalorder %s158, %s160
      %p167 = scmp.eq.s32.totalorder %s24, 1
      %p168 = por %p166, %p167
      %p169 = scmp.ne.s32.totalorder %s160, %s161
      %p170 = scmp.eq.s32.totalorder %s24, 0
      %p171 = por %p169, %p170
      %p172 = scmp.ne.s32.totalorder %s160, %s161
      %p173 = scmp.eq.s32.totalorder %s25, 1
      %p174 = por %p172, %p173
      %p176 = scmp.ne.s32.totalorder %s161, %s175
      %p177 = scmp.eq.s32.totalorder %s25, 0
      %p178 = por %p176, %p177
      %s180 = sadd.s32 %s179, 1
      %p183 = scmp.eq.s32.totalorder %s19, 1
      %p184 = scmp.ne.s32.totalorder %s179, %s181
      %p185 = scmp.eq.s32.totalorder %s19, 0
      %p186 = por %p184, %p185
      %p187 = scmp.ne.s32.totalorder %s179, %s181
      %p188 = scmp.eq.s32.totalorder %s24, 1
      %p189 = por %p187, %p188
      %p190 = scmp.ne.s32.totalorder %s181, %s182
      %p191 = scmp.eq.s32.totalorder %s24, 0
      %p192 = por %p190, %p191
      %p193 = scmp.ne.s32.totalorder %s181, %s182
      %p194 = scmp.eq.s32.totalorder %s25, 1
      %p195 = por %p193, %p194
      %p197 = scmp.ne.s32.totalorder %s182, %s196
      %p198 = scmp.eq.s32.totalorder %s25, 0
      %p199 = por %p197, %p198
      %s200 = ssub.s32 %s26, %s38
      %s201 = ssub.s32 %s27, %s34
      %s202 = sor.u32 %s200, %s201
      %p203 = scmp.eq.s32.totalorder %s202, 0
      %s205 = sadd.s32 %s204, 1
      %s206 = scalar_select %p203, %s204, %s205
      %p209 = pneg %p203
      %p210 = scmp.eq.s32.totalorder %s19, 1
      %p211 = por %p209, %p210
      %p212 = scmp.ne.s32.totalorder %s204, %s207
      %p213 = scmp.eq.s32.totalorder %s19, 0
      %p214 = por %p212, %p213
      %p215 = scmp.ne.s32.totalorder %s204, %s207
      %p216 = scmp.eq.s32.totalorder %s24, 1
      %p217 = por %p215, %p216
      %p218 = scmp.ne.s32.totalorder %s207, %s208
      %p219 = scmp.eq.s32.totalorder %s24, 0
      %p220 = por %p218, %p219
      %p221 = scmp.ne.s32.totalorder %s207, %s208
      %p222 = scmp.eq.s32.totalorder %s25, 1
      %p223 = por %p221, %p222
      %p225 = scmp.ne.s32.totalorder %s208, %s224
      %p226 = scmp.eq.s32.totalorder %s25, 0
      %p227 = por %p225, %p226
      %p228 = scmp.le.s32.totalorder 1, %s19
      %p229 = scmp.lt.s32.totalorder %s19, 3
      %p230 = pnand %p228, %p229
      %p231 = pneg %p230
      // Predicated region
      $region9: #{tpu_custom_call.1} parent=5 // pred_check
        _
      $region10: #{tpu_custom_call.1} parent=5 // pred_check_branch
        %233 = sbr.rel (%p230) target = $region12
      $region11: #{tpu_custom_call.1} parent=5 // pred_region
        %s234 = ssub.s32 %s19, 1
        // Predicated region
        $region13: #{tpu_custom_call.1} parent=11 // pred_check
          %p235 = pneg %p108
        $region14: #{tpu_custom_call.1} parent=11 // pred_check_branch
          %237 = sbr.rel (%p235) target = $region16
        $region15: #{tpu_custom_call.1} parent=11 // pred_region
          _
        $region16: #{tpu_custom_call.1} parent=11 // pred_fallthru
          _
        // Predicated region
        $region17: #{tpu_custom_call.1} parent=11 // pred_check
          %p238 = pneg %p129
        $region18: #{tpu_custom_call.1} parent=11 // pred_check_branch
          %240 = sbr.rel (%p238) target = $region20
        $region19: #{tpu_custom_call.1} parent=11 // pred_region
          _
        $region20: #{tpu_custom_call.1} parent=11 // pred_fallthru
          _
        // Predicated region
        $region21: #{tpu_custom_call.1} parent=11 // pred_check
          %p241 = pneg %p150
        $region22: #{tpu_custom_call.1} parent=11 // pred_check_branch
          %243 = sbr.rel (%p241) target = $region24
        $region23: #{tpu_custom_call.1} parent=11 // pred_region
          _
        $region24: #{tpu_custom_call.1} parent=11 // pred_fallthru
          _
        // Predicated region
        $region25: #{tpu_custom_call.1} parent=11 // pred_check
          %p244 = pneg %p171
        $region26: #{tpu_custom_call.1} parent=11 // pred_check_branch
          %246 = sbr.rel (%p244) target = $region28
        $region27: #{tpu_custom_call.1} parent=11 // pred_region
          _
        $region28: #{tpu_custom_call.1} parent=11 // pred_fallthru
          _
        // Predicated region
        $region29: #{tpu_custom_call.1} parent=11 // pred_check
          %p247 = pneg %p192
        $region30: #{tpu_custom_call.1} parent=11 // pred_check_branch
          %249 = sbr.rel (%p247) target = $region32
        $region31: #{tpu_custom_call.1} parent=11 // pred_region
          _
        $region32: #{tpu_custom_call.1} parent=11 // pred_fallthru
          _
      $region12: #{tpu_custom_call.1} parent=5 // pred_fallthru
        _
      %p250 = scmp.lt.s32.totalorder %s19, 2
      // Predicated region
      $region33: #{tpu_custom_call.1} parent=5 // pred_check
        %p251 = pneg %p250
      $region34: #{tpu_custom_call.1} parent=5 // pred_check_branch
        %253 = sbr.rel (%p251) target = $region36
      $region35: #{tpu_custom_call.1} parent=5 // pred_region
        // Predicated region
        $region37: #{tpu_custom_call.1} parent=35 // pred_check
          %p254 = pneg %p53
        $region38: #{tpu_custom_call.1} parent=35 // pred_check_branch
          %256 = sbr.rel (%p254) target = $region40
        $region39: #{tpu_custom_call.1} parent=35 // pred_region
          %s257 = smul.u32 2, %s27
          %p258 = scmp.lt.s32.totalorder %s26, 1
          %s259 = scalar_select %p258, %s26, 1
          %p260 = scmp.lt.s32.totalorder %s257, 1
          %s261 = scalar_select %p260, %s257, 1
          %s262 = smul.addr %s259, 2
          %s263 = sadd.s32 %s261, %s262
          %s264 = smul.addr %s263, 2
          %s265 = scalar_lea.vmem %s0, %s264
          %s266 = smul.u32 2, %s27
        $region40: #{tpu_custom_call.1} parent=35 // pred_fallthru
          _
        // Predicated region
        $region41: #{tpu_custom_call.1} parent=35 // pred_check
          %p267 = pneg %p81
        $region42: #{tpu_custom_call.1} parent=35 // pred_check_branch
          %269 = sbr.rel (%p267) target = $region44
        $region43: #{tpu_custom_call.1} parent=35 // pred_region
          %s270 = sand.u32 %s71, 1
          %s271 = scalar_lea.sflag [#allocation3], %s270
          %s272 = sand.u32 %s71, 1
          %s273 = smul.addr %s272, 8
          %s274 = scalar_lea.vmem [#allocation2], %s273
          %s275 = smul.u32 2, %s27
          %s277 = ssub.s32 128, 128
          %278 = vsyncadd %s271, %s277
          %s279 = smul.addr %s26, 2
          %s280 = sadd.s32 %s275, %s279
          %s281 = smul.addr %s280, 64
          %s282 = scalar_lea.hbm %s1, %s281
          %s284 = sshll.u32 %s274, 4
          %s285 = int_to_ptr.vmem [resolvable:$true] %s284
          %287 = dma.hbm_to_vmem [thread:$0]  %s282, 128, %s285, %s271
        $region44: #{tpu_custom_call.1} parent=35 // pred_fallthru
          _
      $region36: #{tpu_custom_call.1} parent=5 // pred_fallthru
        _
      %p288 = scmp.le.s32.totalorder 1, %s19
      %p289 = scmp.lt.s32.totalorder %s19, 3
      %p290 = pnand %p288, %p289
      %p291 = pneg %p290
      // Predicated region
      $region45: #{tpu_custom_call.1} parent=5 // pred_check
        _
      $region46: #{tpu_custom_call.1} parent=5 // pred_check_branch
        %293 = sbr.rel (%p290) target = $region48
      $region47: #{tpu_custom_call.1} parent=5 // pred_region
        %s294 = ssub.s32 %s19, 1
        %s295 = sand.u32 %s74, 1
        %s296 = scalar_lea.sflag [#allocation3], %s295
        %s297 = sand.u32 %s74, 1
        %s298 = smul.addr %s297, 8
        %s299 = scalar_lea.vmem [#allocation2], %s298
        // Predicated region
        $region49: #{tpu_custom_call.1} parent=47 // pred_check
          %p300 = pneg %p87
        $region50: #{tpu_custom_call.1} parent=47 // pred_check_branch
          %302 = sbr.rel (%p300) target = $region52
        $region51: #{tpu_custom_call.1} parent=47 // pred_region
          %303 = dma.done %s296, 128
        $region52: #{tpu_custom_call.1} parent=47 // pred_fallthru
          _
        %s304 = smul.u32 2, %s29
        %p305 = scmp.lt.s32.totalorder %s28, 1
        %s306 = scalar_select %p305, %s28, 1
        %p307 = scmp.lt.s32.totalorder %s304, 1
        %s308 = scalar_select %p307, %s304, 1
        %s309 = smul.addr %s306, 2
        %s310 = sadd.s32 %s308, %s309
        %s311 = smul.addr %s310, 2
        %s312 = scalar_lea.vmem %s0, %s311
        %p313 = pneg %p59
        %p314 = pneg %p56
        %s315 = sand.u32 %s74, 1
        %s316 = scalar_lea.sflag [#allocation3], %s315
        %s317 = sand.u32 %s74, 1
        %s318 = smul.addr %s317, 8
        %s319 = scalar_lea.vmem [#allocation2], %s318
        %p320 = pneg %p87
        %p321 = pneg %p84
        %p322 = pneg %p108
        %p323 = pneg %p105
        %p324 = pneg %p129
        %p325 = pneg %p126
        %p326 = pneg %p150
        %p327 = pneg %p147
        %p328 = pneg %p171
        %p329 = pneg %p168
        %p330 = pneg %p192
        %p331 = pneg %p189
        %p332 = pneg %p220
        %p333 = pneg %p217
        %s334 = sand.u32 %s207, 1
        %s335 = scalar_lea.sflag [#allocation4], %s334
        %s336 = sand.u32 %s207, 1
        %s337 = smul.addr %s336, 4
        %s338 = scalar_lea.vmem [#allocation5], %s337
        %s339 = smul.u32 2, %s29
        %p340 = scmp.lt.s32.totalorder %s28, 1
        %s341 = scalar_select %p340, %s28, 1
        %p342 = scmp.lt.s32.totalorder %s339, 1
        %s343 = scalar_select %p342, %s339, 1
        %s344 = smul.addr %s341, 2
        %s345 = sadd.s32 %s343, %s344
        %s346 = smul.addr %s345, 2
        %s347 = scalar_lea.vmem %s0, %s346
        %s348 = smul.u32 2, %s29
        %s349 = smul.u32 2, %s29
        %s350 = smul.u32 2, %s29
        %v352 = vld [vmem:[%s347] sm:$0xf]
        %v353 = vld [vmem:[%s299] sm:$0xff]
        %v354 = vld [vmem:[%s2] sm:$0x3]
        %v355 = vld [vmem:[%s3] sm:$0x3]
        %v357 = vunpack.c.l.b16 %v353
        %v358 = vunpack.c.h.b16 %v353
        %v359 = vpack.c.b16 %v357, %v357
        %v360 = vpack.c.b16 %v358, %v358
        %vm361 = vcmask 64512
        %v363 = vsel %vm361, %v355, 0
        %vm365 = vcmask 1043456
        %v367 = vsel %vm365, %v359, 0
        %v370 = vsel %vm365, %v360, 0
        %372 = vmatprep.subr.bf16.mxu0 %v370
        %373 = vmatpush1.bf16.msra.mxu0 %v367
        %374 = vmatprep.subr.bf16.mxu0 0
        %375 = vmatpush1.bf16.msra.mxu0 0
        %376 = vmatprep.subr.bf16.mxu0 0
        %377 = vmatpush1.bf16.msra.mxu0 0
        %378 = vmatprep.subr.bf16.mxu0 0
        %379 = vmatpush1.bf16.msra.mxu0 0
        %380 = vmatprep.subr.bf16.mxu0 0
        %381 = vmatpush1.bf16.msra.mxu0 0
        %382 = vmatprep.subr.bf16.mxu0 0
        %383 = vmatpush1.bf16.msra.mxu0 0
        %384 = vmatprep.subr.bf16.mxu0 0
        %385 = vmatpush1.bf16.msra.mxu0 0
        %386 = vmatprep.subr.bf16.mxu0 0
        %387 = vmatpush1.bf16.msra.mxu0 0
        %388 = vmatprep.subr.bf16.mxu0 0
        %389 = vmatpush1.bf16.msra.mxu0 0
        %390 = vmatprep.subr.bf16.mxu0 0
        %391 = vmatpush1.bf16.msra.mxu0 0
        %392 = vmatprep.subr.bf16.mxu0 0
        %393 = vmatpush1.bf16.msra.mxu0 0
        %394 = vmatprep.subr.bf16.mxu0 0
        %395 = vmatpush1.bf16.msra.mxu0 0
        %396 = vmatprep.subr.bf16.mxu0 0
        %397 = vmatpush1.bf16.msra.mxu0 0
        %398 = vmatprep.subr.bf16.mxu0 0
        %399 = vmatpush1.bf16.msra.mxu0 0
        %400 = vmatprep.subr.bf16.mxu0 0
        %401 = vmatpush1.bf16.msra.mxu0 0
        %402 = vmatprep.subr.bf16.mxu0 0
        %403 = vmatpush1.bf16.msra.mxu0 0
        %404 = vmatprep.mubr.bf16.mxu0 0
        %405 = vmatmul.mubr.bf16.gmra.mrb[0].mxu0 %v363
        %v406 = vpop.f32.mrb[0].mxu0
        %v407 = vadd.f32 0.0, %v406
        %v408 = vpop.f32.mrb[0].mxu0
        %v409 = vadd.f32 0.0, %v408
        %v410 = vpop.f32.mrb[0].mxu0
        %v411 = vpop.f32.mrb[0].mxu0
        %412 = vdwg.mxu0
        %v415 = vunpack.c.l.s4 1983009808
        %v416 = vunpack.c.0.s8 %v415
        %v417 = vlaneseq
        %v418 = vshrl.u32 %v417, 7
        %v419 = vsub.s32 %v416, %v418
        %v420 = vrot.slane %v352, %v419
        %v421 = vcombine.high %v420, %v420
        %vm422 = vcmask 31744
        %v424 = vsel %vm422, %v354, 0
        %vm426 = vcmask 1041408
        %v428 = vsel %vm426, %v420, 0
        %v431 = vsel %vm426, %v421, 0
        %433 = vmatprep.subr.bf16.mxu0 %v431
        %434 = vmatpush1.bf16.msra.mxu0 %v428
        %435 = vmatprep.subr.bf16.mxu0 0
        %436 = vmatpush1.bf16.msra.mxu0 0
        %437 = vmatprep.subr.bf16.mxu0 0
        %438 = vmatpush1.bf16.msra.mxu0 0
        %439 = vmatprep.subr.bf16.mxu0 0
        %440 = vmatpush1.bf16.msra.mxu0 0
        %441 = vmatprep.subr.bf16.mxu0 0
        %442 = vmatpush1.bf16.msra.mxu0 0
        %443 = vmatprep.subr.bf16.mxu0 0
        %444 = vmatpush1.bf16.msra.mxu0 0
        %445 = vmatprep.subr.bf16.mxu0 0
        %446 = vmatpush1.bf16.msra.mxu0 0
        %447 = vmatprep.subr.bf16.mxu0 0
        %448 = vmatpush1.bf16.msra.mxu0 0
        %449 = vmatprep.subr.bf16.mxu0 0
        %450 = vmatpush1.bf16.msra.mxu0 0
        %451 = vmatprep.subr.bf16.mxu0 0
        %452 = vmatpush1.bf16.msra.mxu0 0
        %453 = vmatprep.subr.bf16.mxu0 0
        %454 = vmatpush1.bf16.msra.mxu0 0
        %455 = vmatprep.subr.bf16.mxu0 0
        %456 = vmatpush1.bf16.msra.mxu0 0
        %457 = vmatprep.subr.bf16.mxu0 0
        %458 = vmatpush1.bf16.msra.mxu0 0
        %459 = vmatprep.subr.bf16.mxu0 0
        %460 = vmatpush1.bf16.msra.mxu0 0
        %461 = vmatprep.subr.bf16.mxu0 0
        %462 = vmatpush1.bf16.msra.mxu0 0
        %463 = vmatprep.subr.bf16.mxu0 0
        %464 = vmatpush1.bf16.msra.mxu0 0
        %465 = vmatprep.mubr.bf16.mxu0 0
        %466 = vmatmul.mubr.bf16.gmra.mrb[0].mxu0 %v424
        %v467 = vpop.f32.mrb[0].mxu0
        %v468 = vadd.f32 %v407, %v467
        %v469 = vpop.f32.mrb[0].mxu0
        %v470 = vadd.f32 %v409, %v469
        %v471 = vpop.f32.mrb[0].mxu0
        %v472 = vpop.f32.mrb[0].mxu0
        %473 = vdwg.mxu0
        %v474 = vld [vmem:[%s4] sm:$0xf]
        %476 = vset.pattern.permute.xlu0 0
        %477 = vperm.xlu0 %476, %v474
        %v478 = vpop.permute.xlu0 %477
        %v480 = vadd.f32 %v468, %v478
        %v481 = vadd.f32 %v470, %v478
        %v482 = vmax.f32 %v480, 0.0
        %v483 = vmax.f32 %v481, 0.0
        %v484 = vld [vmem:[%s5] sm:$0x3]
        %v485 = vpack.c.bf16 %v482, %v482
        %v486 = vpack.c.bf16 %v483, %v483
        %v487 = vld [vmem:[%s6] sm:$0xf]
        %489 = vset.pattern.permute.xlu0 0
        %490 = vperm.xlu0 %489, %v487
        %v491 = vpop.permute.xlu0 %490
        %v494 = vsel %vm422, %v484, 0
        %v497 = vsel %vm426, %v485, 0
        %v500 = vsel %vm426, %v486, 0
        %502 = vmatprep.subr.bf16.mxu0 %v500
        %503 = vmatpush1.bf16.msra.mxu0 %v497
        %504 = vmatprep.subr.bf16.mxu0 0
        %505 = vmatpush1.bf16.msra.mxu0 0
        %506 = vmatprep.subr.bf16.mxu0 0
        %507 = vmatpush1.bf16.msra.mxu0 0
        %508 = vmatprep.subr.bf16.mxu0 0
        %509 = vmatpush1.bf16.msra.mxu0 0
        %510 = vmatprep.subr.bf16.mxu0 0
        %511 = vmatpush1.bf16.msra.mxu0 0
        %512 = vmatprep.subr.bf16.mxu0 0
        %513 = vmatpush1.bf16.msra.mxu0 0
        %514 = vmatprep.subr.bf16.mxu0 0
        %515 = vmatpush1.bf16.msra.mxu0 0
        %516 = vmatprep.subr.bf16.mxu0 0
        %517 = vmatpush1.bf16.msra.mxu0 0
        %518 = vmatprep.subr.bf16.mxu0 0
        %519 = vmatpush1.bf16.msra.mxu0 0
        %520 = vmatprep.subr.bf16.mxu0 0
        %521 = vmatpush1.bf16.msra.mxu0 0
        %522 = vmatprep.subr.bf16.mxu0 0
        %523 = vmatpush1.bf16.msra.mxu0 0
        %524 = vmatprep.subr.bf16.mxu0 0
        %525 = vmatpush1.bf16.msra.mxu0 0
        %526 = vmatprep.subr.bf16.mxu0 0
        %527 = vmatpush1.bf16.msra.mxu0 0
        %528 = vmatprep.subr.bf16.mxu0 0
        %529 = vmatpush1.bf16.msra.mxu0 0
        %530 = vmatprep.subr.bf16.mxu0 0
        %531 = vmatpush1.bf16.msra.mxu0 0
        %532 = vmatprep.subr.bf16.mxu0 0
        %533 = vmatpush1.bf16.msra.mxu0 0
        %534 = vmatprep.mubr.bf16.mxu0 0
        %535 = vmatmul.mubr.bf16.gmra.mrb[0].mxu0 %v494
        %v536 = vpop.f32.mrb[0].mxu0
        %v537 = vadd.f32 %v491, %v536
        %v538 = vpop.f32.mrb[0].mxu0
        %v539 = vadd.f32 %v491, %v538
        %v540 = vpop.f32.mrb[0].mxu0
        %v541 = vpop.f32.mrb[0].mxu0
        %542 = vdwg.mxu0
        %v543 = vxor.u32 %v537, 2147483648
        %v544 = vxor.u32 %v539, 2147483648
        %v545 = vmul.f32 %v543, 1.442695
        %v546 = vpow.pop %v545
        %v547 = vmul.f32 %v544, 1.442695
        %v548 = vpow.pop %v547
        %v549 = vadd.f32 %v546, 1.0
        %v550 = vadd.f32 %v548, 1.0
        %v551 = vrcp.pop %v549
        %v552 = vmul.f32 1.0, %v551
        %v553 = vrcp.pop %v550
        %v554 = vmul.f32 1.0, %v553
        %v555 = vunpack.c.l.bf16 %v352
        %v557 = vcombine.high %v555, %v555
        %v559 = vmul.f32 %v552, %v555
        %v560 = vmul.f32 %v554, %v557
        %v561 = vpack.c.bf16 %v559, %v559
        %v562 = vpack.c.bf16 %v560, %v560
        %v565 = vcombine.low %v561, %v562
        %v567 = vunpack.c.l.s4 1983009808
        %v568 = vunpack.c.0.s8 %v567
        %v569 = vlaneseq
        %v570 = vshrl.u32 %v569, 7
        %v571 = vsub.s32 %v568, %v570
        %v572 = vrot.slane %v565, %v571
        %574 = vst [vmem:[%s338] sm:$0xf] %v572
        %s575 = sand.u32 %s207, 1
        %s576 = scalar_lea.sflag [#allocation4], %s575
        %s577 = sand.u32 %s207, 1
        %s578 = smul.addr %s577, 4
        %s579 = scalar_lea.vmem [#allocation5], %s578
        // Predicated region
        $region53: #{tpu_custom_call.1} parent=47 // pred_check
          %p580 = pneg %p217
        $region54: #{tpu_custom_call.1} parent=47 // pred_check_branch
          %582 = sbr.rel (%p580) target = $region56
        $region55: #{tpu_custom_call.1} parent=47 // pred_region
          %s583 = smul.u32 2, %s29
          %s585 = ssub.s32 64, 64
          %586 = vsyncadd %s576, %s585
          %s587 = smul.addr %s28, 2
          %s588 = sadd.s32 %s583, %s587
          %s589 = smul.addr %s588, 32
          %s590 = scalar_lea.hbm %s7, %s589
          %s592 = sshll.u32 %s579, 4
          %s593 = int_to_ptr.vmem [resolvable:$true] %s592
          %595 = dma.vmem_to_hbm [thread:$0]  %s593, 64, %s590, %s576
        $region56: #{tpu_custom_call.1} parent=47 // pred_fallthru
          _
      $region48: #{tpu_custom_call.1} parent=5 // pred_fallthru
        _
      %p596 = scmp.le.s32.totalorder 2, %s19
      // Predicated region
      $region57: #{tpu_custom_call.1} parent=5 // pred_check
        %p597 = pneg %p596
      $region58: #{tpu_custom_call.1} parent=5 // pred_check_branch
        %599 = sbr.rel (%p597) target = $region60
      $region59: #{tpu_custom_call.1} parent=5 // pred_region
        %s600 = ssub.s32 %s19, 2
        // Predicated region
        $region61: #{tpu_custom_call.1} parent=59 // pred_check
          %p601 = pneg %p223
        $region62: #{tpu_custom_call.1} parent=59 // pred_check_branch
          %603 = sbr.rel (%p601) target = $region64
        $region63: #{tpu_custom_call.1} parent=59 // pred_region
          %s604 = sand.u32 %s208, 1
          %s605 = scalar_lea.sflag [#allocation4], %s604
          %s606 = sand.u32 %s208, 1
          %s607 = smul.addr %s606, 4
          %s608 = scalar_lea.vmem [#allocation5], %s607
          %609 = dma.done %s605, 64
        $region64: #{tpu_custom_call.1} parent=59 // pred_fallthru
          _
      $region60: #{tpu_custom_call.1} parent=5 // pred_fallthru
        _
    $region6: #{tpu_custom_call.1} parent=1 // loop_footer
      %s23 = sadd.s32 1, %s19
    $region7: #{tpu_custom_call.1} parent=1 // loop_footer_branch
      %18 = sbr.rel target = $region3
    $region8: #{tpu_custom_call.1} parent=1 // loop_exit
      _
    %610 = vsyncpa [#allocation3], 1
    %s611 = scalar_lea.sflag [#allocation3], 1
    %612 = vsyncpa %s611, 1
    %613 = vsyncpa [#allocation4], 1
    %s614 = scalar_lea.sflag [#allocation4], 1
    %615 = vsyncpa %s614, 1

</llo_original>
